<compile_context>
chip_gen: v5e
topology: v5e:2x2
jax: 0.10.0
libtpu: 0.0.40
codegen_flags: <defaults>
</compile_context>

<pallas_src>
import jax
import jax.numpy as jnp
from jax.experimental import pallas as pl
from jax.experimental.pallas import tpu as pltpu


# ----------------------------------------------------------------------------
# Kernel
# ----------------------------------------------------------------------------
def _make_join_kernel(n_inputs):
    """Fused cat(acts, 1) -> Linear -> ReLU for `n_inputs` activation tensors."""

    def kernel(*refs):
        act_refs = refs[:n_inputs]
        w_refs = refs[n_inputs:2 * n_inputs]
        b_ref = refs[2 * n_inputs]
        o_ref = refs[2 * n_inputs + 1]

        # Split matmuls instead of lane-axis concat; bf16 MXU, f32 accumulate.
        y = jnp.dot(act_refs[0][...].astype(jnp.bfloat16), w_refs[0][...],
                    preferred_element_type=jnp.float32)
        for a_ref, w_ref in zip(act_refs[1:], w_refs[1:]):
            y = y + jnp.dot(a_ref[...].astype(jnp.bfloat16), w_ref[...],
                            preferred_element_type=jnp.float32)

        # Epilogue (bias + ReLU) in f32; cast only on the final store.
        o_ref[...] = jnp.maximum(y + b_ref[...], 0.0).astype(o_ref.dtype)

    return kernel


# ----------------------------------------------------------------------------
# Tiling helpers
# ----------------------------------------------------------------------------
def _round_up(x, m):
    return ((x + m - 1) // m) * m


def _num_tensorcores():
    # v7x has 2 TensorCores per chip; v5e/v6e have 1.
    try:
        kind = (jax.devices()[0].device_kind or "").lower()
        if "v7" in kind or "7x" in kind:
            return 2
    except Exception:
        pass
    return 1


def _pick_tile(batch, max_tile=1024):
    ntc = _num_tensorcores()
    if ntc > 1 and batch >= 2 * 8:
        # Keep >= ntc grid steps so the ("parallel",) batch axis shards across TCs.
        tm = _round_up(pl.cdiv(batch, ntc), 8)
    else:
        # Single TC: one big tile, grid collapses to 1 (no per-step overhead).
        tm = _round_up(batch, 8)
    return min(tm, max_tile)


# ----------------------------------------------------------------------------
# Pallas wrapper
# ----------------------------------------------------------------------------
def join_fc(acts, w_splits, bias, *, out_dtype=jnp.float32, max_tile=1024):
    """Fused cat(acts, 1) -> Linear(sum Di, H) -> ReLU, gridded over batch.

    acts:     tuple of (B, Di) activations (f32 or bf16).
    w_splits: tuple of (Di, H) bf16 row-slices of the Linear weight.
    bias:     (1, H) f32 bias.
    """
    assert len(acts) == len(w_splits) and len(acts) >= 1
    B = acts[0].shape[0]
    H = w_splits[0].shape[1]

    tm = _pick_tile(B, max_tile)
    grid = (pl.cdiv(B, tm),)

    def row_spec(d):
        # Batch-tiled activation rows; feature dim is the full (last) dim.
        return pl.BlockSpec((tm, d), lambda i: (i, 0))

    def resident_spec(arr):
        # Constant block index -> stays VMEM-resident across grid steps.
        return pl.BlockSpec(arr.shape, lambda i: (0, 0))

    in_specs = ([row_spec(a.shape[1]) for a in acts]
                + [resident_spec(ws) for ws in w_splits]
                + [resident_spec(bias)])
    out_specs = pl.BlockSpec((tm, H), lambda i: (i, 0))  # lane-dense output

    # Advisory cost estimate so XLA can schedule/overlap this small kernel.
    D = sum(a.shape[1] for a in acts)
    flops = 2 * B * D * H + 2 * B * H  # matmuls + bias + relu
    bytes_accessed = (sum(int(a.size) * a.dtype.itemsize for a in acts)
                      + sum(int(w.size) * w.dtype.itemsize for w in w_splits)
                      + int(bias.size) * bias.dtype.itemsize
                      + B * H * jnp.dtype(out_dtype).itemsize)
    cost = pl.CostEstimate(flops=flops, transcendentals=0,
                           bytes_accessed=bytes_accessed)

    return pl.pallas_call(
        _make_join_kernel(len(acts)),
        out_shape=jax.ShapeDtypeStruct((B, H), out_dtype),
        grid_spec=pltpu.PrefetchScalarGridSpec(
            num_scalar_prefetch=0,
            grid=grid,
            in_specs=in_specs,
            out_specs=out_specs,
        ),
        compiler_params=pltpu.CompilerParams(
            dimension_semantics=("parallel",)),  # shards batch tiles across TCs on v7x
        cost_estimate=cost,
    )(*acts, *w_splits, bias)


# ----------------------------------------------------------------------------
# One-time parameter prep (hoisted out of the per-call path)
# ----------------------------------------------------------------------------
def init_join_params(w, b, split_dims):
    """Split the Linear weight by input segment and cast ONCE (not per call)."""
    assert sum(split_dims) <= w.shape[0]
    w_bf16 = jnp.asarray(w).astype(jnp.bfloat16)
    splits = []
    off = 0
    for d in split_dims:
        splits.append(w_bf16[off:off + d])
        off += d
    bias = jnp.asarray(b, dtype=jnp.float32).reshape(1, -1)
    return tuple(splits), bias


class Join:
    """mode='cat', after_process = Linear(D, H) + ReLU, fused in one Pallas kernel."""

    def __init__(self, w, b, split_dims, out_dtype=jnp.float32):
        self.w_splits, self.b = init_join_params(w, b, split_dims)
        self.out_dtype = out_dtype

    def forward(self, x, m, c=None):
        acts = (x, m) if c is None else (x, m, c)
        return join_fc(acts, self.w_splits[:len(acts)], self.b,
                       out_dtype=self.out_dtype)

    def forward_list(self, x_list):
        acts = tuple(x_list)
        return join_fc(acts, self.w_splits[:len(acts)], self.b,
                       out_dtype=self.out_dtype)


# ----------------------------------------------------------------------------
# Test
# ----------------------------------------------------------------------------
if __name__ == "__main__":
    # Shapes consistent with the module's forward:
    #   x: (B, Dx), m: (B, Dm), c: (B, Dc) -> cat -> (B, D) -> Linear(D, H) -> ReLU
    Dx, Dm, Dc, H = 32, 32, 64, 128  # H multiple of 128 (lane-dense output)
    D = Dx + Dm + Dc

    key = jax.random.PRNGKey(0)
    kx, km, kc, kw, kb = jax.random.split(key, 5)

    w = jax.random.normal(kw, (D, H), dtype=jnp.float32) * 0.05
    b = jax.random.normal(kb, (1, H), dtype=jnp.float32) * 0.05

    # Weights are split/cast exactly once here (per the perf review).
    join = Join(w, b, split_dims=(Dx, Dm, Dc))

    # bf16 weights => slightly looser tolerance vs the f32 reference.
    ATOL = RTOL = 3e-2

    def ref(x, m, c):
        parts = [x, m] if c is None else [x, m, c]
        j = jnp.concatenate(parts, axis=1)
        return jnp.maximum(j @ w[: j.shape[1]] + b, 0.0)

    B1 = 256
    x1 = jax.random.normal(kx, (B1, Dx), dtype=jnp.float32)
    m1 = jax.random.normal(km, (B1, Dm), dtype=jnp.float32)
    c1 = jax.random.normal(kc, (B1, Dc), dtype=jnp.float32)

    # --- Case 1: B=256 -> one 256-row tile (grid=1) on v5e/v6e, 2 core-parallel
    #             128-row tiles on v7x ---
    out1 = jax.block_until_ready(join.forward(x1, m1, c1))
    assert out1.shape == (B1, H)
    assert jnp.allclose(out1, ref(x1, m1, c1), atol=ATOL, rtol=RTOL), "mismatch B=256"

    # --- Case 2: small batch, single tile ---
    out2 = jax.block_until_ready(join.forward(x1[:8], m1[:8], c1[:8]))
    assert jnp.allclose(out2, ref(x1[:8], m1[:8], c1[:8]), atol=ATOL, rtol=RTOL), \
        "mismatch B=8"

    # --- Case 3: c=None path (torch.cat((x, m), 1)) ---
    out3 = jax.block_until_ready(join.forward(x1[:8], m1[:8], None))
    assert jnp.allclose(out3, ref(x1[:8], m1[:8], None), atol=ATOL, rtol=RTOL), \
        "mismatch c=None"

    # --- Case 4: batch not a multiple of 8 / of the tile: last block is padded
    #             by Pallas and out-of-bounds output rows are masked stores ---
    B4 = 107
    out4 = jax.block_until_ready(join.forward(x1[:B4], m1[:B4], c1[:B4]))
    assert out4.shape == (B4, H)
    assert jnp.allclose(out4, ref(x1[:B4], m1[:B4], c1[:B4]), atol=ATOL, rtol=RTOL), \
        "mismatch B=107"

    # --- Case 5: forward_list with bf16 activations + bf16 output
    #             (halved DMA in both directions when the model allows it) ---
    join_bf16 = Join(w, b, split_dims=(Dx, Dm, Dc), out_dtype=jnp.bfloat16)
    acts_bf16 = [x1[:64].astype(jnp.bfloat16),
                 m1[:64].astype(jnp.bfloat16),
                 c1[:64].astype(jnp.bfloat16)]
    out5 = jax.block_until_ready(join_bf16.forward_list(acts_bf16))
    assert out5.dtype == jnp.bfloat16
    assert jnp.allclose(out5.astype(jnp.float32), ref(x1[:64], m1[:64], c1[:64]),
                        atol=5e-2, rtol=5e-2), "mismatch bf16 forward_list"

    print("KERNEL_OK")
</pallas_src>

<mosaic_0001>
module attributes {stable_mosaic.version = 11 : i64} {
  func.func @kernel(%arg0: i32, %arg1: memref<256x32xf32, #tpu.memory_space<vmem>>, %arg2: memref<256x32xf32, #tpu.memory_space<vmem>>, %arg3: memref<256x64xf32, #tpu.memory_space<vmem>>, %arg4: memref<32x128xbf16, #tpu.memory_space<vmem>>, %arg5: memref<32x128xbf16, #tpu.memory_space<vmem>>, %arg6: memref<64x128xbf16, #tpu.memory_space<vmem>>, %arg7: memref<1x128xf32, #tpu.memory_space<vmem>>, %arg8: memref<256x128xf32, #tpu.memory_space<vmem>>) attributes {dimension_semantics = [#tpu.dimension_semantics<parallel>], iteration_bounds = array<i64: 1>, scalar_prefetch = 0 : i64, scratch_operands = 0 : i64, tpu.core_type = #tpu.core_type<tc>, window_params = [{transform_indices = @transform_0, window_bounds = array<i64: 256, 32>}, {transform_indices = @transform_1, window_bounds = array<i64: 256, 32>}, {transform_indices = @transform_2, window_bounds = array<i64: 256, 64>}, {pipeline_mode = #tpu.pipeline_mode<synchronous>, transform_indices = @transform_3, window_bounds = array<i64: 32, 128>}, {pipeline_mode = #tpu.pipeline_mode<synchronous>, transform_indices = @transform_4, window_bounds = array<i64: 32, 128>}, {pipeline_mode = #tpu.pipeline_mode<synchronous>, transform_indices = @transform_5, window_bounds = array<i64: 64, 128>}, {pipeline_mode = #tpu.pipeline_mode<synchronous>, transform_indices = @transform_6, window_bounds = array<i64: 1, 128>}, {transform_indices = @transform_7, window_bounds = array<i64: 256, 128>}]} {
    %c0 = arith.constant 0 : index
    %c0_0 = arith.constant 0 : index
    %0 = vector.load %arg1[%c0, %c0_0] : memref<256x32xf32, #tpu.memory_space<vmem>>, vector<256x32xf32>
    %1 = arith.truncf %0 : vector<256x32xf32> to vector<256x32xbf16>
    %c0_1 = arith.constant 0 : index
    %c0_2 = arith.constant 0 : index
    %2 = vector.load %arg4[%c0_1, %c0_2] : memref<32x128xbf16, #tpu.memory_space<vmem>>, vector<32x128xbf16>
    %cst = arith.constant dense<0.000000e+00> : vector<256x128xf32>
    %3 = tpu.matmul %1, %2, %cst {dimension_numbers = #tpu.dot_dimension_numbers<[1], [0], [0], [1], [0, 0, 1, 1], [], []>} : vector<256x32xbf16>, vector<32x128xbf16>, vector<256x128xf32> -> vector<256x128xf32>
    %c0_3 = arith.constant 0 : index
    %c0_4 = arith.constant 0 : index
    %4 = vector.load %arg2[%c0_3, %c0_4] : memref<256x32xf32, #tpu.memory_space<vmem>>, vector<256x32xf32>
    %5 = arith.truncf %4 : vector<256x32xf32> to vector<256x32xbf16>
    %c0_5 = arith.constant 0 : index
    %c0_6 = arith.constant 0 : index
    %6 = vector.load %arg5[%c0_5, %c0_6] : memref<32x128xbf16, #tpu.memory_space<vmem>>, vector<32x128xbf16>
    %cst_7 = arith.constant dense<0.000000e+00> : vector<256x128xf32>
    %7 = tpu.matmul %5, %6, %cst_7 {dimension_numbers = #tpu.dot_dimension_numbers<[1], [0], [0], [1], [0, 0, 1, 1], [], []>} : vector<256x32xbf16>, vector<32x128xbf16>, vector<256x128xf32> -> vector<256x128xf32>
    %8 = arith.addf %3, %7 : vector<256x128xf32>
    %c0_8 = arith.constant 0 : index
    %c0_9 = arith.constant 0 : index
    %9 = vector.load %arg3[%c0_8, %c0_9] : memref<256x64xf32, #tpu.memory_space<vmem>>, vector<256x64xf32>
    %10 = arith.truncf %9 : vector<256x64xf32> to vector<256x64xbf16>
    %c0_10 = arith.constant 0 : index
    %c0_11 = arith.constant 0 : index
    %11 = vector.load %arg6[%c0_10, %c0_11] : memref<64x128xbf16, #tpu.memory_space<vmem>>, vector<64x128xbf16>
    %cst_12 = arith.constant dense<0.000000e+00> : vector<256x128xf32>
    %12 = tpu.matmul %10, %11, %cst_12 {dimension_numbers = #tpu.dot_dimension_numbers<[1], [0], [0], [1], [0, 0, 1, 1], [], []>} : vector<256x64xbf16>, vector<64x128xbf16>, vector<256x128xf32> -> vector<256x128xf32>
    %13 = arith.addf %8, %12 : vector<256x128xf32>
    %c0_13 = arith.constant 0 : index
    %c0_14 = arith.constant 0 : index
    %14 = vector.load %arg7[%c0_13, %c0_14] : memref<1x128xf32, #tpu.memory_space<vmem>>, vector<1x128xf32>
    %15 = vector.broadcast %14 : vector<1x128xf32> to vector<256x128xf32>
    %16 = arith.addf %13, %15 : vector<256x128xf32>
    %cst_15 = arith.constant 0.000000e+00 : f32
    %17 = vector.broadcast %cst_15 : f32 to vector<256x128xf32>
    %18 = arith.maximumf %16, %17 : vector<256x128xf32>
    %c0_16 = arith.constant 0 : index
    %c0_17 = arith.constant 0 : index
    %19 = vector.load %arg8[%c0_16, %c0_17] : memref<256x128xf32, #tpu.memory_space<vmem>>, vector<256x128xf32>
    tpu.vector_store %arg8[%c0_16, %c0_17], %18 {strides = array<i32>} : memref<256x128xf32, #tpu.memory_space<vmem>>, vector<256x128xf32>,
    return
  }
  func.func @transform_0(%arg0: i32) -> (i32, i32) {
    %c0_i32 = arith.constant 0 : i32
    %c0_i32_0 = arith.constant 0 : i32
    return %arg0, %c0_i32 : i32, i32
  }
  func.func @transform_1(%arg0: i32) -> (i32, i32) {
    %c0_i32 = arith.constant 0 : i32
    %c0_i32_0 = arith.constant 0 : i32
    return %arg0, %c0_i32 : i32, i32
  }
  func.func @transform_2(%arg0: i32) -> (i32, i32) {
    %c0_i32 = arith.constant 0 : i32
    %c0_i32_0 = arith.constant 0 : i32
    return %arg0, %c0_i32 : i32, i32
  }
  func.func @transform_3(%arg0: i32) -> (i32, i32) {
    %c0_i32 = arith.constant 0 : i32
    %c0_i32_0 = arith.constant 0 : i32
    %c0_i32_1 = arith.constant 0 : i32
    return %c0_i32, %c0_i32_0 : i32, i32
  }
  func.func @transform_4(%arg0: i32) -> (i32, i32) {
    %c0_i32 = arith.constant 0 : i32
    %c0_i32_0 = arith.constant 0 : i32
    %c0_i32_1 = arith.constant 0 : i32
    return %c0_i32, %c0_i32_0 : i32, i32
  }
  func.func @transform_5(%arg0: i32) -> (i32, i32) {
    %c0_i32 = arith.constant 0 : i32
    %c0_i32_0 = arith.constant 0 : i32
    %c0_i32_1 = arith.constant 0 : i32
    return %c0_i32, %c0_i32_0 : i32, i32
  }
  func.func @transform_6(%arg0: i32) -> (i32, i32) {
    %c0_i32 = arith.constant 0 : i32
    %c0_i32_0 = arith.constant 0 : i32
    %c0_i32_1 = arith.constant 0 : i32
    return %c0_i32, %c0_i32_0 : i32, i32
  }
  func.func @transform_7(%arg0: i32) -> (i32, i32) {
    %c0_i32 = arith.constant 0 : i32
    %c0_i32_0 = arith.constant 0 : i32
    return %arg0, %c0_i32 : i32, i32
  }
}

</mosaic_0001>

<llo_original>
// kernel: tpu_custom_call.1
$region0: #{tpu_custom_call.1}
  #allocation0 [shape = 'u32[]', space=smem, size = 0x4, offset = 0x4, fixed_abs, tag = 'smem constant byte address 0x4 - core index']
  #allocation1 [shape = 'u32[72,128]{1,0:T(1,128)}', space=vmem, size = 0x9000, scoped, tag = 'internal scratch']
  %s0 = inlined_call_operand.vmem [shape: f32[256,32], index: 0, kind: input, shape index: {}]
  %s1 = inlined_call_operand.vmem [shape: f32[256,32], index: 1, kind: input, shape index: {}]
  %s2 = inlined_call_operand.vmem [shape: f32[256,64], index: 2, kind: input, shape index: {}]
  %s3 = inlined_call_operand.vmem [shape: bf16[32,128], index: 3, kind: input, shape index: {}]
  %s4 = inlined_call_operand.vmem [shape: bf16[32,128], index: 4, kind: input, shape index: {}]
  %s5 = inlined_call_operand.vmem [shape: bf16[64,128], index: 5, kind: input, shape index: {}]
  %s6 = inlined_call_operand.vmem [shape: f32[1,128], index: 6, kind: input, shape index: {}]
  %s7 = inlined_call_operand.hbm [shape: f32[256,128], index: 7, kind: output, shape index: {}]
  %s8 = sld [smem:[#allocation0]]
  $region38: #{tpu_custom_call.1} parent=0
    _
  %s10 = ssub.s32 1, %s8
  %s11 = scalar_select 0, %s10, %s8
  $region1: #{tpu_custom_call.1} parent=0
    #allocation2 [shape = 'u8[131072]{0}', space=vmem, size = 0x20000, scoped, tag = 'output window, operand 0, single buffered']
    #allocation3 [shape = 's32[1]{0}', space=sflag, size = 0x4, scoped, tag = 'scoped memory for tpu_custom_call.1']
    %12 = vsyncpa [#allocation3], 0
    // Predicated region
    $region2: #{tpu_custom_call.1} parent=1 // pred_check
      _
    $region3: #{tpu_custom_call.1} parent=1 // pred_check_branch
      %14 = sbr.rel (0) target = $region5
    $region4: #{tpu_custom_call.1} parent=1 // pred_region
      _
    $region5: #{tpu_custom_call.1} parent=1 // pred_fallthru
      _
    // Predicated region
    $region6: #{tpu_custom_call.1} parent=1 // pred_check
      _
    $region7: #{tpu_custom_call.1} parent=1 // pred_check_branch
      %16 = sbr.rel (0) target = $region9
    $region8: #{tpu_custom_call.1} parent=1 // pred_region
      _
    $region9: #{tpu_custom_call.1} parent=1 // pred_fallthru
      _
    // Predicated region
    $region10: #{tpu_custom_call.1} parent=1 // pred_check
      _
    $region11: #{tpu_custom_call.1} parent=1 // pred_check_branch
      %18 = sbr.rel (0) target = $region13
    $region12: #{tpu_custom_call.1} parent=1 // pred_region
      _
    $region13: #{tpu_custom_call.1} parent=1 // pred_fallthru
      _
    // Predicated region
    $region14: #{tpu_custom_call.1} parent=1 // pred_check
      _
    $region15: #{tpu_custom_call.1} parent=1 // pred_check_branch
      %20 = sbr.rel (0) target = $region17
    $region16: #{tpu_custom_call.1} parent=1 // pred_region
      _
    $region17: #{tpu_custom_call.1} parent=1 // pred_fallthru
      _
    // Predicated region
    $region18: #{tpu_custom_call.1} parent=1 // pred_check
      _
    $region19: #{tpu_custom_call.1} parent=1 // pred_check_branch
      %22 = sbr.rel (0) target = $region21
    $region20: #{tpu_custom_call.1} parent=1 // pred_region
      _
    $region21: #{tpu_custom_call.1} parent=1 // pred_fallthru
      _
    // Predicated region
    $region22: #{tpu_custom_call.1} parent=1 // pred_check
      _
    $region23: #{tpu_custom_call.1} parent=1 // pred_check_branch
      %24 = sbr.rel (0) target = $region25
    $region24: #{tpu_custom_call.1} parent=1 // pred_region
      _
    $region25: #{tpu_custom_call.1} parent=1 // pred_fallthru
      _
    // Predicated region
    $region26: #{tpu_custom_call.1} parent=1 // pred_check
      _
    $region27: #{tpu_custom_call.1} parent=1 // pred_check_branch
      %26 = sbr.rel (0) target = $region29
    $region28: #{tpu_custom_call.1} parent=1 // pred_region
      _
    $region29: #{tpu_custom_call.1} parent=1 // pred_fallthru
      _
    %v28 = vld [vmem:[%s0] sm:$0xff]
    %v29 = vld [vmem:[%s0 + $0x8] sm:$0xff]
    %v30 = vld [vmem:[%s0 + $0x10] sm:$0xff]
    %v31 = vld [vmem:[%s0 + $0x18] sm:$0xff]
    %v32 = vld [vmem:[%s0 + $0x20] sm:$0xff]
    %v33 = vld [vmem:[%s0 + $0x28] sm:$0xff]
    %v34 = vld [vmem:[%s0 + $0x30] sm:$0xff]
    %v35 = vld [vmem:[%s0 + $0x38] sm:$0xff]
    %v36 = vld [vmem:[%s0 + $0x40] sm:$0xff]
    %v37 = vld [vmem:[%s0 + $0x48] sm:$0xff]
    %v38 = vld [vmem:[%s0 + $0x50] sm:$0xff]
    %v39 = vld [vmem:[%s0 + $0x58] sm:$0xff]
    %v40 = vld [vmem:[%s0 + $0x60] sm:$0xff]
    %v41 = vld [vmem:[%s0 + $0x68] sm:$0xff]
    %v42 = vld [vmem:[%s0 + $0x70] sm:$0xff]
    %v43 = vld [vmem:[%s0 + $0x78] sm:$0xff]
    %v44 = vld [vmem:[%s0 + $0x80] sm:$0xff]
    %v45 = vld [vmem:[%s0 + $0x88] sm:$0xff]
    %v46 = vld [vmem:[%s0 + $0x90] sm:$0xff]
    %v47 = vld [vmem:[%s0 + $0x98] sm:$0xff]
    %v48 = vld [vmem:[%s0 + $0xa0] sm:$0xff]
    %v49 = vld [vmem:[%s0 + $0xa8] sm:$0xff]
    %v50 = vld [vmem:[%s0 + $0xb0] sm:$0xff]
    %v51 = vld [vmem:[%s0 + $0xb8] sm:$0xff]
    %v52 = vld [vmem:[%s0 + $0xc0] sm:$0xff]
    %v53 = vld [vmem:[%s0 + $0xc8] sm:$0xff]
    %v54 = vld [vmem:[%s0 + $0xd0] sm:$0xff]
    %v55 = vld [vmem:[%s0 + $0xd8] sm:$0xff]
    %v56 = vld [vmem:[%s0 + $0xe0] sm:$0xff]
    %v57 = vld [vmem:[%s0 + $0xe8] sm:$0xff]
    %v58 = vld [vmem:[%s0 + $0xf0] sm:$0xff]
    %v59 = vld [vmem:[%s0 + $0xf8] sm:$0xff]
    %v60 = vpack.c.bf16 %v29, %v28
    %v61 = vpack.c.bf16 %v31, %v30
    %v62 = vpack.c.bf16 %v33, %v32
    %v63 = vpack.c.bf16 %v35, %v34
    %v64 = vpack.c.bf16 %v37, %v36
    %v65 = vpack.c.bf16 %v39, %v38
    %v66 = vpack.c.bf16 %v41, %v40
    %v67 = vpack.c.bf16 %v43, %v42
    %v68 = vpack.c.bf16 %v45, %v44
    %v69 = vpack.c.bf16 %v47, %v46
    %v70 = vpack.c.bf16 %v49, %v48
    %v71 = vpack.c.bf16 %v51, %v50
    %v72 = vpack.c.bf16 %v53, %v52
    %v73 = vpack.c.bf16 %v55, %v54
    %v74 = vpack.c.bf16 %v57, %v56
    %v75 = vpack.c.bf16 %v59, %v58
    %v76 = vld [vmem:[%s3] sm:$0xf]
    %v77 = vld [vmem:[%s3 + $0x4] sm:$0xf]
    %v78 = vld [vmem:[%s3 + $0x8] sm:$0xf]
    %v79 = vld [vmem:[%s3 + $0xc] sm:$0xf]
    %v80 = vld [vmem:[%s1] sm:$0xff]
    %v81 = vld [vmem:[%s1 + $0x8] sm:$0xff]
    %v82 = vld [vmem:[%s1 + $0x10] sm:$0xff]
    %v83 = vld [vmem:[%s1 + $0x18] sm:$0xff]
    %v84 = vld [vmem:[%s1 + $0x20] sm:$0xff]
    %v85 = vld [vmem:[%s1 + $0x28] sm:$0xff]
    %v86 = vld [vmem:[%s1 + $0x30] sm:$0xff]
    %v87 = vld [vmem:[%s1 + $0x38] sm:$0xff]
    %v88 = vld [vmem:[%s1 + $0x40] sm:$0xff]
    %v89 = vld [vmem:[%s1 + $0x48] sm:$0xff]
    %v90 = vld [vmem:[%s1 + $0x50] sm:$0xff]
    %v91 = vld [vmem:[%s1 + $0x58] sm:$0xff]
    %v92 = vld [vmem:[%s1 + $0x60] sm:$0xff]
    %v93 = vld [vmem:[%s1 + $0x68] sm:$0xff]
    %v94 = vld [vmem:[%s1 + $0x70] sm:$0xff]
    %v95 = vld [vmem:[%s1 + $0x78] sm:$0xff]
    %v96 = vld [vmem:[%s1 + $0x80] sm:$0xff]
    %v97 = vld [vmem:[%s1 + $0x88] sm:$0xff]
    %v98 = vld [vmem:[%s1 + $0x90] sm:$0xff]
    %v99 = vld [vmem:[%s1 + $0x98] sm:$0xff]
    %v100 = vld [vmem:[%s1 + $0xa0] sm:$0xff]
    %v101 = vld [vmem:[%s1 + $0xa8] sm:$0xff]
    %v102 = vld [vmem:[%s1 + $0xb0] sm:$0xff]
    %v103 = vld [vmem:[%s1 + $0xb8] sm:$0xff]
    %v104 = vld [vmem:[%s1 + $0xc0] sm:$0xff]
    %v105 = vld [vmem:[%s1 + $0xc8] sm:$0xff]
    %v106 = vld [vmem:[%s1 + $0xd0] sm:$0xff]
    %v107 = vld [vmem:[%s1 + $0xd8] sm:$0xff]
    %v108 = vld [vmem:[%s1 + $0xe0] sm:$0xff]
    %v109 = vld [vmem:[%s1 + $0xe8] sm:$0xff]
    %v110 = vld [vmem:[%s1 + $0xf0] sm:$0xff]
    %v111 = vld [vmem:[%s1 + $0xf8] sm:$0xff]
    %v112 = vpack.c.bf16 %v81, %v80
    %v113 = vpack.c.bf16 %v83, %v82
    %v114 = vpack.c.bf16 %v85, %v84
    %v115 = vpack.c.bf16 %v87, %v86
    %v116 = vpack.c.bf16 %v89, %v88
    %v117 = vpack.c.bf16 %v91, %v90
    %v118 = vpack.c.bf16 %v93, %v92
    %v119 = vpack.c.bf16 %v95, %v94
    %v120 = vpack.c.bf16 %v97, %v96
    %v121 = vpack.c.bf16 %v99, %v98
    %v122 = vpack.c.bf16 %v101, %v100
    %v123 = vpack.c.bf16 %v103, %v102
    %v124 = vpack.c.bf16 %v105, %v104
    %v125 = vpack.c.bf16 %v107, %v106
    %v126 = vpack.c.bf16 %v109, %v108
    %v127 = vpack.c.bf16 %v111, %v110
    %v128 = vld [vmem:[%s4] sm:$0xf]
    %v129 = vld [vmem:[%s4 + $0x4] sm:$0xf]
    %v130 = vld [vmem:[%s4 + $0x8] sm:$0xf]
    %v131 = vld [vmem:[%s4 + $0xc] sm:$0xf]
    %v136 = vunpack.c.l.b16 %v128
    %v137 = vunpack.c.l.b16 %v129
    %v138 = vunpack.c.l.b16 %v130
    %v139 = vunpack.c.l.b16 %v131
    %v140 = vpack.c.b16 %v137, %v136
    %v141 = vpack.c.b16 %v139, %v138
    %vm144 = vcmask 261120
    %v146 = vsel %vm144, %v112, 0
    %v149 = vsel %vm144, %v113, 0
    %v152 = vsel %vm144, %v114, 0
    %v155 = vsel %vm144, %v115, 0
    %v158 = vsel %vm144, %v116, 0
    %v161 = vsel %vm144, %v117, 0
    %v164 = vsel %vm144, %v118, 0
    %v167 = vsel %vm144, %v119, 0
    %v170 = vsel %vm144, %v120, 0
    %v173 = vsel %vm144, %v121, 0
    %v176 = vsel %vm144, %v122, 0
    %v179 = vsel %vm144, %v123, 0
    %v182 = vsel %vm144, %v124, 0
    %v185 = vsel %vm144, %v125, 0
    %v188 = vsel %vm144, %v126, 0
    %v191 = vsel %vm144, %v127, 0
    %193 = vmatpush.bf16.msra.mxu0 0
    %194 = vmatpush.bf16.msra.mxu0 0
    %195 = vmatpush.bf16.msra.mxu0 0
    %196 = vmatpush.bf16.msra.mxu0 0
    %197 = vmatpush.bf16.msra.mxu0 0
    %198 = vmatpush.bf16.msra.mxu0 0
    %199 = vmatpush.bf16.msra.mxu0 %v141
    %200 = vmatpush.bf16.msra.mxu0 %v140
    %201 = vmatmul.bf16.gmra.mxu0 %v146
    %v202 = vpop.f32.mrf.mxu0
    %v203 = vadd.f32 0.0, %v202
    %v204 = vpop.f32.mrf.mxu0
    %v205 = vadd.f32 0.0, %v204
    %206 = vmatmul.bf16.gmra.mxu0 %v149
    %v207 = vpop.f32.mrf.mxu0
    %v208 = vadd.f32 0.0, %v207
    %v209 = vpop.f32.mrf.mxu0
    %v210 = vadd.f32 0.0, %v209
    %211 = vmatmul.bf16.gmra.mxu0 %v152
    %v212 = vpop.f32.mrf.mxu0
    %v213 = vadd.f32 0.0, %v212
    %v214 = vpop.f32.mrf.mxu0
    %v215 = vadd.f32 0.0, %v214
    %216 = vmatmul.bf16.gmra.mxu0 %v155
    %v217 = vpop.f32.mrf.mxu0
    %v218 = vadd.f32 0.0, %v217
    %v219 = vpop.f32.mrf.mxu0
    %v220 = vadd.f32 0.0, %v219
    %221 = vmatmul.bf16.gmra.mxu0 %v158
    %v222 = vpop.f32.mrf.mxu0
    %v223 = vadd.f32 0.0, %v222
    %v224 = vpop.f32.mrf.mxu0
    %v225 = vadd.f32 0.0, %v224
    %226 = vmatmul.bf16.gmra.mxu0 %v161
    %v227 = vpop.f32.mrf.mxu0
    %v228 = vadd.f32 0.0, %v227
    %v229 = vpop.f32.mrf.mxu0
    %v230 = vadd.f32 0.0, %v229
    %231 = vmatmul.bf16.gmra.mxu0 %v164
    %v232 = vpop.f32.mrf.mxu0
    %v233 = vadd.f32 0.0, %v232
    %v234 = vpop.f32.mrf.mxu0
    %v235 = vadd.f32 0.0, %v234
    %236 = vmatmul.bf16.gmra.mxu0 %v167
    %v237 = vpop.f32.mrf.mxu0
    %v238 = vadd.f32 0.0, %v237
    %v239 = vpop.f32.mrf.mxu0
    %v240 = vadd.f32 0.0, %v239
    %241 = vmatmul.bf16.gmra.mxu0 %v170
    %v242 = vpop.f32.mrf.mxu0
    %v243 = vadd.f32 0.0, %v242
    %v244 = vpop.f32.mrf.mxu0
    %v245 = vadd.f32 0.0, %v244
    %246 = vmatmul.bf16.gmra.mxu0 %v173
    %v247 = vpop.f32.mrf.mxu0
    %v248 = vadd.f32 0.0, %v247
    %v249 = vpop.f32.mrf.mxu0
    %v250 = vadd.f32 0.0, %v249
    %251 = vmatmul.bf16.gmra.mxu0 %v176
    %v252 = vpop.f32.mrf.mxu0
    %v253 = vadd.f32 0.0, %v252
    %v254 = vpop.f32.mrf.mxu0
    %v255 = vadd.f32 0.0, %v254
    %256 = vmatmul.bf16.gmra.mxu0 %v179
    %v257 = vpop.f32.mrf.mxu0
    %v258 = vadd.f32 0.0, %v257
    %v259 = vpop.f32.mrf.mxu0
    %v260 = vadd.f32 0.0, %v259
    %261 = vmatmul.bf16.gmra.mxu0 %v182
    %v262 = vpop.f32.mrf.mxu0
    %v263 = vadd.f32 0.0, %v262
    %v264 = vpop.f32.mrf.mxu0
    %v265 = vadd.f32 0.0, %v264
    %266 = vmatmul.bf16.gmra.mxu0 %v185
    %v267 = vpop.f32.mrf.mxu0
    %v268 = vadd.f32 0.0, %v267
    %v269 = vpop.f32.mrf.mxu0
    %v270 = vadd.f32 0.0, %v269
    %271 = vmatmul.bf16.gmra.mxu0 %v188
    %v272 = vpop.f32.mrf.mxu0
    %v273 = vadd.f32 0.0, %v272
    %v274 = vpop.f32.mrf.mxu0
    %v275 = vadd.f32 0.0, %v274
    %276 = vmatmul.bf16.gmra.mxu0 %v191
    %v277 = vpop.f32.mrf.mxu0
    %v278 = vadd.f32 0.0, %v277
    %v279 = vpop.f32.mrf.mxu0
    %v280 = vadd.f32 0.0, %v279
    %281 = vdwg.mxu0
    %v286 = vunpack.c.l.b16 %v76
    %v287 = vunpack.c.l.b16 %v77
    %v288 = vunpack.c.l.b16 %v78
    %v289 = vunpack.c.l.b16 %v79
    %v290 = vpack.c.b16 %v287, %v286
    %v291 = vpack.c.b16 %v289, %v288
    %v295 = vsel %vm144, %v60, 0
    %v298 = vsel %vm144, %v61, 0
    %v301 = vsel %vm144, %v62, 0
    %v304 = vsel %vm144, %v63, 0
    %v307 = vsel %vm144, %v64, 0
    %v310 = vsel %vm144, %v65, 0
    %v313 = vsel %vm144, %v66, 0
    %v316 = vsel %vm144, %v67, 0
    %v319 = vsel %vm144, %v68, 0
    %v322 = vsel %vm144, %v69, 0
    %v325 = vsel %vm144, %v70, 0
    %v328 = vsel %vm144, %v71, 0
    %v331 = vsel %vm144, %v72, 0
    %v334 = vsel %vm144, %v73, 0
    %v337 = vsel %vm144, %v74, 0
    %v340 = vsel %vm144, %v75, 0
    %342 = vmatpush.bf16.msra.mxu0 0
    %343 = vmatpush.bf16.msra.mxu0 0
    %344 = vmatpush.bf16.msra.mxu0 0
    %345 = vmatpush.bf16.msra.mxu0 0
    %346 = vmatpush.bf16.msra.mxu0 0
    %347 = vmatpush.bf16.msra.mxu0 0
    %348 = vmatpush.bf16.msra.mxu0 %v291
    %349 = vmatpush.bf16.msra.mxu0 %v290
    %350 = vmatmul.bf16.gmra.mxu0 %v295
    %v351 = vpop.f32.mrf.mxu0
    %v352 = vadd.f32 %v203, %v351
    %v353 = vpop.f32.mrf.mxu0
    %v354 = vadd.f32 %v205, %v353
    %355 = vmatmul.bf16.gmra.mxu0 %v298
    %v356 = vpop.f32.mrf.mxu0
    %v357 = vadd.f32 %v208, %v356
    %v358 = vpop.f32.mrf.mxu0
    %v359 = vadd.f32 %v210, %v358
    %360 = vmatmul.bf16.gmra.mxu0 %v301
    %v361 = vpop.f32.mrf.mxu0
    %v362 = vadd.f32 %v213, %v361
    %v363 = vpop.f32.mrf.mxu0
    %v364 = vadd.f32 %v215, %v363
    %365 = vmatmul.bf16.gmra.mxu0 %v304
    %v366 = vpop.f32.mrf.mxu0
    %v367 = vadd.f32 %v218, %v366
    %v368 = vpop.f32.mrf.mxu0
    %v369 = vadd.f32 %v220, %v368
    %370 = vmatmul.bf16.gmra.mxu0 %v307
    %v371 = vpop.f32.mrf.mxu0
    %v372 = vadd.f32 %v223, %v371
    %v373 = vpop.f32.mrf.mxu0
    %v374 = vadd.f32 %v225, %v373
    %375 = vmatmul.bf16.gmra.mxu0 %v310
    %v376 = vpop.f32.mrf.mxu0
    %v377 = vadd.f32 %v228, %v376
    %v378 = vpop.f32.mrf.mxu0
    %v379 = vadd.f32 %v230, %v378
    %380 = vmatmul.bf16.gmra.mxu0 %v313
    %v381 = vpop.f32.mrf.mxu0
    %v382 = vadd.f32 %v233, %v381
    %v383 = vpop.f32.mrf.mxu0
    %v384 = vadd.f32 %v235, %v383
    %385 = vmatmul.bf16.gmra.mxu0 %v316
    %v386 = vpop.f32.mrf.mxu0
    %v387 = vadd.f32 %v238, %v386
    %v388 = vpop.f32.mrf.mxu0
    %v389 = vadd.f32 %v240, %v388
    %390 = vmatmul.bf16.gmra.mxu0 %v319
    %v391 = vpop.f32.mrf.mxu0
    %v392 = vadd.f32 %v243, %v391
    %v393 = vpop.f32.mrf.mxu0
    %v394 = vadd.f32 %v245, %v393
    %395 = vmatmul.bf16.gmra.mxu0 %v322
    %v396 = vpop.f32.mrf.mxu0
    %v397 = vadd.f32 %v248, %v396
    %v398 = vpop.f32.mrf.mxu0
    %v399 = vadd.f32 %v250, %v398
    %400 = vmatmul.bf16.gmra.mxu0 %v325
    %v401 = vpop.f32.mrf.mxu0
    %v402 = vadd.f32 %v253, %v401
    %v403 = vpop.f32.mrf.mxu0
    %v404 = vadd.f32 %v255, %v403
    %405 = vmatmul.bf16.gmra.mxu0 %v328
    %v406 = vpop.f32.mrf.mxu0
    %v407 = vadd.f32 %v258, %v406
    %v408 = vpop.f32.mrf.mxu0
    %v409 = vadd.f32 %v260, %v408
    %410 = vmatmul.bf16.gmra.mxu0 %v331
    %v411 = vpop.f32.mrf.mxu0
    %v412 = vadd.f32 %v263, %v411
    %v413 = vpop.f32.mrf.mxu0
    %v414 = vadd.f32 %v265, %v413
    %415 = vmatmul.bf16.gmra.mxu0 %v334
    %v416 = vpop.f32.mrf.mxu0
    %v417 = vadd.f32 %v268, %v416
    %v418 = vpop.f32.mrf.mxu0
    %v419 = vadd.f32 %v270, %v418
    %420 = vmatmul.bf16.gmra.mxu0 %v337
    %v421 = vpop.f32.mrf.mxu0
    %v422 = vadd.f32 %v273, %v421
    %v423 = vpop.f32.mrf.mxu0
    %v424 = vadd.f32 %v275, %v423
    %425 = vmatmul.bf16.gmra.mxu0 %v340
    %v426 = vpop.f32.mrf.mxu0
    %v427 = vadd.f32 %v278, %v426
    %v428 = vpop.f32.mrf.mxu0
    %v429 = vadd.f32 %v280, %v428
    %430 = vdwg.mxu0
    %v431 = vld [vmem:[%s2] sm:$0xff]
    %v432 = vld [vmem:[%s2 + $0x8] sm:$0xff]
    %v433 = vld [vmem:[%s2 + $0x10] sm:$0xff]
    %v434 = vld [vmem:[%s2 + $0x18] sm:$0xff]
    %v435 = vld [vmem:[%s2 + $0x20] sm:$0xff]
    %v436 = vld [vmem:[%s2 + $0x28] sm:$0xff]
    %v437 = vld [vmem:[%s2 + $0x30] sm:$0xff]
    %v438 = vld [vmem:[%s2 + $0x38] sm:$0xff]
    %v439 = vld [vmem:[%s2 + $0x40] sm:$0xff]
    %v440 = vld [vmem:[%s2 + $0x48] sm:$0xff]
    %v441 = vld [vmem:[%s2 + $0x50] sm:$0xff]
    %v442 = vld [vmem:[%s2 + $0x58] sm:$0xff]
    %v443 = vld [vmem:[%s2 + $0x60] sm:$0xff]
    %v444 = vld [vmem:[%s2 + $0x68] sm:$0xff]
    %v445 = vld [vmem:[%s2 + $0x70] sm:$0xff]
    %v446 = vld [vmem:[%s2 + $0x78] sm:$0xff]
    %v447 = vld [vmem:[%s2 + $0x80] sm:$0xff]
    %v448 = vld [vmem:[%s2 + $0x88] sm:$0xff]
    %v449 = vld [vmem:[%s2 + $0x90] sm:$0xff]
    %v450 = vld [vmem:[%s2 + $0x98] sm:$0xff]
    %v451 = vld [vmem:[%s2 + $0xa0] sm:$0xff]
    %v452 = vld [vmem:[%s2 + $0xa8] sm:$0xff]
    %v453 = vld [vmem:[%s2 + $0xb0] sm:$0xff]
    %v454 = vld [vmem:[%s2 + $0xb8] sm:$0xff]
    %v455 = vld [vmem:[%s2 + $0xc0] sm:$0xff]
    %v456 = vld [vmem:[%s2 + $0xc8] sm:$0xff]
    %v457 = vld [vmem:[%s2 + $0xd0] sm:$0xff]
    %v458 = vld [vmem:[%s2 + $0xd8] sm:$0xff]
    %v459 = vld [vmem:[%s2 + $0xe0] sm:$0xff]
    %v460 = vld [vmem:[%s2 + $0xe8] sm:$0xff]
    %v461 = vld [vmem:[%s2 + $0xf0] sm:$0xff]
    %v462 = vld [vmem:[%s2 + $0xf8] sm:$0xff]
    %v463 = vpack.c.bf16 %v432, %v431
    %v464 = vpack.c.bf16 %v434, %v433
    %v465 = vpack.c.bf16 %v436, %v435
    %v466 = vpack.c.bf16 %v438, %v437
    %v467 = vpack.c.bf16 %v440, %v439
    %v468 = vpack.c.bf16 %v442, %v441
    %v469 = vpack.c.bf16 %v444, %v443
    %v470 = vpack.c.bf16 %v446, %v445
    %v471 = vpack.c.bf16 %v448, %v447
    %v472 = vpack.c.bf16 %v450, %v449
    %v473 = vpack.c.bf16 %v452, %v451
    %v474 = vpack.c.bf16 %v454, %v453
    %v475 = vpack.c.bf16 %v456, %v455
    %v476 = vpack.c.bf16 %v458, %v457
    %v477 = vpack.c.bf16 %v460, %v459
    %v478 = vpack.c.bf16 %v462, %v461
    %v479 = vld [vmem:[%s5] sm:$0xf]
    %v480 = vld [vmem:[%s5 + $0x4] sm:$0xf]
    %v481 = vld [vmem:[%s5 + $0x8] sm:$0xf]
    %v482 = vld [vmem:[%s5 + $0xc] sm:$0xf]
    %v483 = vld [vmem:[%s5 + $0x10] sm:$0xf]
    %v484 = vld [vmem:[%s5 + $0x14] sm:$0xf]
    %v485 = vld [vmem:[%s5 + $0x18] sm:$0xf]
    %v486 = vld [vmem:[%s5 + $0x1c] sm:$0xf]
    %v495 = vunpack.c.l.b16 %v479
    %v496 = vunpack.c.l.b16 %v480
    %v497 = vunpack.c.l.b16 %v481
    %v498 = vunpack.c.l.b16 %v482
    %v499 = vunpack.c.l.b16 %v483
    %v500 = vunpack.c.l.b16 %v484
    %v501 = vunpack.c.l.b16 %v485
    %v502 = vunpack.c.l.b16 %v486
    %v503 = vpack.c.b16 %v496, %v495
    %v504 = vpack.c.b16 %v498, %v497
    %v505 = vpack.c.b16 %v500, %v499
    %v506 = vpack.c.b16 %v502, %v501
    %vm511 = vcmask 523264
    %v513 = vsel %vm511, %v463, 0
    %v516 = vsel %vm511, %v464, 0
    %v519 = vsel %vm511, %v465, 0
    %v522 = vsel %vm511, %v466, 0
    %v525 = vsel %vm511, %v467, 0
    %v528 = vsel %vm511, %v468, 0
    %v531 = vsel %vm511, %v469, 0
    %v534 = vsel %vm511, %v470, 0
    %v537 = vsel %vm511, %v471, 0
    %v540 = vsel %vm511, %v472, 0
    %v543 = vsel %vm511, %v473, 0
    %v546 = vsel %vm511, %v474, 0
    %v549 = vsel %vm511, %v475, 0
    %v552 = vsel %vm511, %v476, 0
    %v555 = vsel %vm511, %v477, 0
    %v558 = vsel %vm511, %v478, 0
    %560 = vmatpush.bf16.msra.mxu0 0
    %561 = vmatpush.bf16.msra.mxu0 0
    %562 = vmatpush.bf16.msra.mxu0 0
    %563 = vmatpush.bf16.msra.mxu0 0
    %564 = vmatpush.bf16.msra.mxu0 %v506
    %565 = vmatpush.bf16.msra.mxu0 %v505
    %566 = vmatpush.bf16.msra.mxu0 %v504
    %567 = vmatpush.bf16.msra.mxu0 %v503
    %568 = vmatmul.bf16.gmra.mxu0 %v513
    %v569 = vpop.f32.mrf.mxu0
    %v570 = vadd.f32 0.0, %v569
    %v571 = vpop.f32.mrf.mxu0
    %v572 = vadd.f32 0.0, %v571
    %573 = vmatmul.bf16.gmra.mxu0 %v516
    %v574 = vpop.f32.mrf.mxu0
    %v575 = vadd.f32 0.0, %v574
    %v576 = vpop.f32.mrf.mxu0
    %v577 = vadd.f32 0.0, %v576
    %578 = vmatmul.bf16.gmra.mxu0 %v519
    %v579 = vpop.f32.mrf.mxu0
    %v580 = vadd.f32 0.0, %v579
    %v581 = vpop.f32.mrf.mxu0
    %v582 = vadd.f32 0.0, %v581
    %583 = vmatmul.bf16.gmra.mxu0 %v522
    %v584 = vpop.f32.mrf.mxu0
    %v585 = vadd.f32 0.0, %v584
    %v586 = vpop.f32.mrf.mxu0
    %v587 = vadd.f32 0.0, %v586
    %588 = vmatmul.bf16.gmra.mxu0 %v525
    %v589 = vpop.f32.mrf.mxu0
    %v590 = vadd.f32 0.0, %v589
    %v591 = vpop.f32.mrf.mxu0
    %v592 = vadd.f32 0.0, %v591
    %593 = vmatmul.bf16.gmra.mxu0 %v528
    %v594 = vpop.f32.mrf.mxu0
    %v595 = vadd.f32 0.0, %v594
    %v596 = vpop.f32.mrf.mxu0
    %v597 = vadd.f32 0.0, %v596
    %598 = vmatmul.bf16.gmra.mxu0 %v531
    %v599 = vpop.f32.mrf.mxu0
    %v600 = vadd.f32 0.0, %v599
    %v601 = vpop.f32.mrf.mxu0
    %v602 = vadd.f32 0.0, %v601
    %603 = vmatmul.bf16.gmra.mxu0 %v534
    %v604 = vpop.f32.mrf.mxu0
    %v605 = vadd.f32 0.0, %v604
    %v606 = vpop.f32.mrf.mxu0
    %v607 = vadd.f32 0.0, %v606
    %608 = vmatmul.bf16.gmra.mxu0 %v537
    %v609 = vpop.f32.mrf.mxu0
    %v610 = vadd.f32 0.0, %v609
    %v611 = vpop.f32.mrf.mxu0
    %v612 = vadd.f32 0.0, %v611
    %613 = vmatmul.bf16.gmra.mxu0 %v540
    %v614 = vpop.f32.mrf.mxu0
    %v615 = vadd.f32 0.0, %v614
    %v616 = vpop.f32.mrf.mxu0
    %v617 = vadd.f32 0.0, %v616
    %618 = vmatmul.bf16.gmra.mxu0 %v543
    %v619 = vpop.f32.mrf.mxu0
    %v620 = vadd.f32 0.0, %v619
    %v621 = vpop.f32.mrf.mxu0
    %v622 = vadd.f32 0.0, %v621
    %623 = vmatmul.bf16.gmra.mxu0 %v546
    %v624 = vpop.f32.mrf.mxu0
    %v625 = vadd.f32 0.0, %v624
    %v626 = vpop.f32.mrf.mxu0
    %v627 = vadd.f32 0.0, %v626
    %628 = vmatmul.bf16.gmra.mxu0 %v549
    %v629 = vpop.f32.mrf.mxu0
    %v630 = vadd.f32 0.0, %v629
    %v631 = vpop.f32.mrf.mxu0
    %v632 = vadd.f32 0.0, %v631
    %633 = vmatmul.bf16.gmra.mxu0 %v552
    %v634 = vpop.f32.mrf.mxu0
    %v635 = vadd.f32 0.0, %v634
    %v636 = vpop.f32.mrf.mxu0
    %v637 = vadd.f32 0.0, %v636
    %638 = vmatmul.bf16.gmra.mxu0 %v555
    %v639 = vpop.f32.mrf.mxu0
    %v640 = vadd.f32 0.0, %v639
    %v641 = vpop.f32.mrf.mxu0
    %v642 = vadd.f32 0.0, %v641
    %643 = vmatmul.bf16.gmra.mxu0 %v558
    %v644 = vpop.f32.mrf.mxu0
    %v645 = vadd.f32 0.0, %v644
    %v646 = vpop.f32.mrf.mxu0
    %v647 = vadd.f32 0.0, %v646
    %648 = vdwg.mxu0
    %v649 = vadd.f32 %v352, %v570
    %v650 = vadd.f32 %v354, %v572
    %v651 = vadd.f32 %v357, %v575
    %v652 = vadd.f32 %v359, %v577
    %v653 = vadd.f32 %v362, %v580
    %v654 = vadd.f32 %v364, %v582
    %v655 = vadd.f32 %v367, %v585
    %v656 = vadd.f32 %v369, %v587
    %v657 = vadd.f32 %v372, %v590
    %v658 = vadd.f32 %v374, %v592
    %v659 = vadd.f32 %v377, %v595
    %v660 = vadd.f32 %v379, %v597
    %v661 = vadd.f32 %v382, %v600
    %v662 = vadd.f32 %v384, %v602
    %v663 = vadd.f32 %v387, %v605
    %v664 = vadd.f32 %v389, %v607
    %v665 = vadd.f32 %v392, %v610
    %v666 = vadd.f32 %v394, %v612
    %v667 = vadd.f32 %v397, %v615
    %v668 = vadd.f32 %v399, %v617
    %v669 = vadd.f32 %v402, %v620
    %v670 = vadd.f32 %v404, %v622
    %v671 = vadd.f32 %v407, %v625
    %v672 = vadd.f32 %v409, %v627
    %v673 = vadd.f32 %v412, %v630
    %v674 = vadd.f32 %v414, %v632
    %v675 = vadd.f32 %v417, %v635
    %v676 = vadd.f32 %v419, %v637
    %v677 = vadd.f32 %v422, %v640
    %v678 = vadd.f32 %v424, %v642
    %v679 = vadd.f32 %v427, %v645
    %v680 = vadd.f32 %v429, %v647
    %v681 = vld [vmem:[%s6] sm:$0x1]
    %v683 = vperm.slane %v681, 0
    %v685 = vadd.f32 %v649, %v683
    %v686 = vadd.f32 %v650, %v683
    %v687 = vadd.f32 %v651, %v683
    %v688 = vadd.f32 %v652, %v683
    %v689 = vadd.f32 %v653, %v683
    %v690 = vadd.f32 %v654, %v683
    %v691 = vadd.f32 %v655, %v683
    %v692 = vadd.f32 %v656, %v683
    %v693 = vadd.f32 %v657, %v683
    %v694 = vadd.f32 %v658, %v683
    %v695 = vadd.f32 %v659, %v683
    %v696 = vadd.f32 %v660, %v683
    %v697 = vadd.f32 %v661, %v683
    %v698 = vadd.f32 %v662, %v683
    %v699 = vadd.f32 %v663, %v683
    %v700 = vadd.f32 %v664, %v683
    %v701 = vadd.f32 %v665, %v683
    %v702 = vadd.f32 %v666, %v683
    %v703 = vadd.f32 %v667, %v683
    %v704 = vadd.f32 %v668, %v683
    %v705 = vadd.f32 %v669, %v683
    %v706 = vadd.f32 %v670, %v683
    %v707 = vadd.f32 %v671, %v683
    %v708 = vadd.f32 %v672, %v683
    %v709 = vadd.f32 %v673, %v683
    %v710 = vadd.f32 %v674, %v683
    %v711 = vadd.f32 %v675, %v683
    %v712 = vadd.f32 %v676, %v683
    %v713 = vadd.f32 %v677, %v683
    %v714 = vadd.f32 %v678, %v683
    %v715 = vadd.f32 %v679, %v683
    %v716 = vadd.f32 %v680, %v683
    %v717 = vmax.f32 %v685, 0.0
    %v718 = vmax.f32 %v686, 0.0
    %v719 = vmax.f32 %v687, 0.0
    %v720 = vmax.f32 %v688, 0.0
    %v721 = vmax.f32 %v689, 0.0
    %v722 = vmax.f32 %v690, 0.0
    %v723 = vmax.f32 %v691, 0.0
    %v724 = vmax.f32 %v692, 0.0
    %v725 = vmax.f32 %v693, 0.0
    %v726 = vmax.f32 %v694, 0.0
    %v727 = vmax.f32 %v695, 0.0
    %v728 = vmax.f32 %v696, 0.0
    %v729 = vmax.f32 %v697, 0.0
    %v730 = vmax.f32 %v698, 0.0
    %v731 = vmax.f32 %v699, 0.0
    %v732 = vmax.f32 %v700, 0.0
    %v733 = vmax.f32 %v701, 0.0
    %v734 = vmax.f32 %v702, 0.0
    %v735 = vmax.f32 %v703, 0.0
    %v736 = vmax.f32 %v704, 0.0
    %v737 = vmax.f32 %v705, 0.0
    %v738 = vmax.f32 %v706, 0.0
    %v739 = vmax.f32 %v707, 0.0
    %v740 = vmax.f32 %v708, 0.0
    %v741 = vmax.f32 %v709, 0.0
    %v742 = vmax.f32 %v710, 0.0
    %v743 = vmax.f32 %v711, 0.0
    %v744 = vmax.f32 %v712, 0.0
    %v745 = vmax.f32 %v713, 0.0
    %v746 = vmax.f32 %v714, 0.0
    %v747 = vmax.f32 %v715, 0.0
    %v748 = vmax.f32 %v716, 0.0
    %749 = vst [vmem:[#allocation2] sm:$0xff] %v717
    %750 = vst [vmem:[#allocation2 + $0x8] sm:$0xff] %v718
    %751 = vst [vmem:[#allocation2 + $0x10] sm:$0xff] %v719
    %752 = vst [vmem:[#allocation2 + $0x18] sm:$0xff] %v720
    %753 = vst [vmem:[#allocation2 + $0x20] sm:$0xff] %v721
    %754 = vst [vmem:[#allocation2 + $0x28] sm:$0xff] %v722
    %755 = vst [vmem:[#allocation2 + $0x30] sm:$0xff] %v723
    %756 = vst [vmem:[#allocation2 + $0x38] sm:$0xff] %v724
    %757 = vst [vmem:[#allocation2 + $0x40] sm:$0xff] %v725
    %758 = vst [vmem:[#allocation2 + $0x48] sm:$0xff] %v726
    %759 = vst [vmem:[#allocation2 + $0x50] sm:$0xff] %v727
    %760 = vst [vmem:[#allocation2 + $0x58] sm:$0xff] %v728
    %761 = vst [vmem:[#allocation2 + $0x60] sm:$0xff] %v729
    %762 = vst [vmem:[#allocation2 + $0x68] sm:$0xff] %v730
    %763 = vst [vmem:[#allocation2 + $0x70] sm:$0xff] %v731
    %764 = vst [vmem:[#allocation2 + $0x78] sm:$0xff] %v732
    %765 = vst [vmem:[#allocation2 + $0x80] sm:$0xff] %v733
    %766 = vst [vmem:[#allocation2 + $0x88] sm:$0xff] %v734
    %767 = vst [vmem:[#allocation2 + $0x90] sm:$0xff] %v735
    %768 = vst [vmem:[#allocation2 + $0x98] sm:$0xff] %v736
    %769 = vst [vmem:[#allocation2 + $0xa0] sm:$0xff] %v737
    %770 = vst [vmem:[#allocation2 + $0xa8] sm:$0xff] %v738
    %771 = vst [vmem:[#allocation2 + $0xb0] sm:$0xff] %v739
    %772 = vst [vmem:[#allocation2 + $0xb8] sm:$0xff] %v740
    %773 = vst [vmem:[#allocation2 + $0xc0] sm:$0xff] %v741
    %774 = vst [vmem:[#allocation2 + $0xc8] sm:$0xff] %v742
    %775 = vst [vmem:[#allocation2 + $0xd0] sm:$0xff] %v743
    %776 = vst [vmem:[#allocation2 + $0xd8] sm:$0xff] %v744
    %777 = vst [vmem:[#allocation2 + $0xe0] sm:$0xff] %v745
    %778 = vst [vmem:[#allocation2 + $0xe8] sm:$0xff] %v746
    %779 = vst [vmem:[#allocation2 + $0xf0] sm:$0xff] %v747
    %780 = vst [vmem:[#allocation2 + $0xf8] sm:$0xff] %v748
    // Predicated region
    $region30: #{tpu_custom_call.1} parent=1 // pred_check
      _
    $region31: #{tpu_custom_call.1} parent=1 // pred_check_branch
      %782 = sbr.rel (0) target = $region33
    $region32: #{tpu_custom_call.1} parent=1 // pred_region
      %784 = vsyncadd [#allocation3], 0
      %s785 = sshll.u32 [#allocation2], 4
      %s786 = int_to_ptr.vmem [resolvable:$true] %s785
      %s787 = sshll.u32 %s7, 4
      %s788 = int_to_ptr.hbm [resolvable:$true] %s787
      %793 = dma.vmem_to_hbm [thread:$0]  %s786, 4096, %s788, [#allocation3], 128, 128, 8
    $region33: #{tpu_custom_call.1} parent=1 // pred_fallthru
      _
    // Predicated region
    $region34: #{tpu_custom_call.1} parent=1 // pred_check
      _
    $region35: #{tpu_custom_call.1} parent=1 // pred_check_branch
      %795 = sbr.rel (0) target = $region37
    $region36: #{tpu_custom_call.1} parent=1 // pred_region
      %797 = dma.done [#allocation3], 4096
    $region37: #{tpu_custom_call.1} parent=1 // pred_fallthru
      _
    %798 = vsyncpa [#allocation3], 1

</llo_original>
